<compile_context>
chip_gen: v5e
topology: v5e:2x2
jax: 0.10.0
libtpu: 0.0.40
codegen_flags: <defaults>
</compile_context>

<pallas_src>
import functools

import numpy as np
import jax
import jax.numpy as jnp
from jax import lax
from jax.experimental import pallas as pl
from jax.experimental.pallas import tpu as pltpu


# ------------------------------ Pallas kernel -------------------------------

def _fused_encoder_kernel(a0t_ref, w0rt_ref, w1t_ref, w2t_ref, rmask_ref,
                          alpha_ref, out_ref, *, n_batch, s_vol, cout,
                          shifts, kc1_pad):
    f32 = jnp.float32
    num_off = len(shifts)
    P = out_ref.shape[1]

    # ---- hoisted constants (built once, reused by every stage) ----
    # Per-batch lane-segment masks for InstanceNorm (identical for all 3 INs).
    lane = lax.broadcasted_iota(jnp.int32, (cout, P), 1)
    seg = [jnp.logical_and(lane >= n * s_vol,
                           lane < (n + 1) * s_vol).astype(f32)
           for n in range(n_batch)]
    # Bias block for the stride-1 convs: first row ones folds the conv bias.
    bias_block = (lax.broadcasted_iota(jnp.int32, (cout, P), 0) == 0).astype(f32)
    # Boundary masks: ONE row per tap (de-replicated input); broadcast over the
    # Cout sublanes happens in the multiply below.
    rm = rmask_ref[...]
    inv_s = 1.0 / float(s_vol)

    def instance_norm_prelu(y, alpha):
        # InstanceNorm3d (eps=1e-5, no affine): per-(sample, channel) stats over
        # each lane segment of S positions; one-pass E[y^2] - mean^2 in f32.
        # Dropout(p=0.0) == identity; PReLU with a single learnable alpha.
        mean_map = jnp.zeros_like(y)
        var_map = jnp.zeros_like(y)
        for n in range(n_batch):
            m = seg[n]
            ym = y * m
            mu = jnp.sum(ym, axis=1, keepdims=True) * inv_s
            ms = jnp.sum(ym * ym, axis=1, keepdims=True) * inv_s
            mean_map = mean_map + mu * m
            var_map = var_map + (ms - mu * mu) * m
        yn = (y - mean_map) * lax.rsqrt(var_map + 1e-5)
        return jnp.where(yn >= 0.0, yn, alpha * yn)
    # TODO(synk): if the XLU ever binds (larger Cout/batch), replace the masked
    # lane reductions above with one MXU matmul against a constant
    # segment-indicator matrix (perf-review opt #6); at this size XLU has slack.

    def conv_same(y, wt):
        # 3x3x3 stride-1 same-padding conv on the VMEM-resident activation:
        # 27 lane rotations (XLU slot, free) + boundary masks build the
        # transposed im2col stack.  Mask multiplies stay f32 (v5e has no bf16
        # VALU); parts are packed to bf16 two at a time so each concatenated
        # piece is a native (16,128) bf16 tile; one 256-deep MXU matmul.
        parts = []
        for k in range(num_off):
            sh = shifts[k]
            ys = y if sh == 0 else pltpu.roll(y, sh, 1)
            parts.append(ys * rm[k:k + 1, :])
        parts.append(bias_block)                      # -> even number of parts
        packed = [jnp.concatenate(parts[2 * i:2 * i + 2],
                                  axis=0).astype(jnp.bfloat16)
                  for i in range(len(parts) // 2)]
        pad_rows = kc1_pad - len(parts) * cout
        if pad_rows:
            packed.append(jnp.zeros((pad_rows, P), jnp.bfloat16))
        ystack = jnp.concatenate(packed, axis=0)      # (kc1_pad, P) bf16
        return jnp.dot(wt, ystack, preferred_element_type=f32)

    # conv0 + residual conv share the same im2col RHS -> one fused MXU matmul.
    yz = jnp.dot(w0rt_ref[...], a0t_ref[...], preferred_element_type=f32)
    y = instance_norm_prelu(yz[:cout, :], alpha_ref[0])
    # two stride-1 residual-unit convs + ADN
    y = instance_norm_prelu(conv_same(y, w1t_ref[...]), alpha_ref[1])
    y = instance_norm_prelu(conv_same(y, w2t_ref[...]), alpha_ref[2])
    # residual add (bottom half of the fused strided matmul result)
    out_ref[...] = y + yz[cout:, :]


def _detect_roll_sign():
    """Probe pltpu.roll's rotation direction once (outside the jitted forward)
    so the static shift table is independent of the convention."""
    def kern(x_ref, o_ref):
        o_ref[...] = pltpu.roll(x_ref[...], 1, 1)
    x = jnp.tile(jnp.arange(128, dtype=jnp.float32)[None, :], (8, 1))
    out = pl.pallas_call(
        kern, out_shape=jax.ShapeDtypeStruct((8, 128), jnp.float32))(x)
    # np.roll convention: out[i] = x[i - shift]  ->  out[0,0] == 127.
    return 1 if int(out[0, 0]) == 1 else -1


# --------------------------- parameter setup (glue) -------------------------

def init_bayes_conv(key, cin, cout, k, *, posterior_mu_init, posterior_rho_init, std):
    ks = jax.random.split(key, 6)
    shp = (k, k, k, cin, cout)
    return dict(
        w_mu=posterior_mu_init + std * jax.random.normal(ks[0], shp, jnp.float32),
        w_rho=posterior_rho_init + std * jax.random.normal(ks[1], shp, jnp.float32),
        b_mu=posterior_mu_init + std * jax.random.normal(ks[2], (cout,), jnp.float32),
        b_rho=posterior_rho_init + std * jax.random.normal(ks[3], (cout,), jnp.float32),
        w_eps=jax.random.normal(ks[4], shp, jnp.float32),
        b_eps=jax.random.normal(ks[5], (cout,), jnp.float32),
    )


def sample_weights(p):
    # Reparameterization trick (eps drawn once, stored with the params).
    w = p["w_mu"] + jax.nn.softplus(p["w_rho"]) * p["w_eps"]
    b = p["b_mu"] + jax.nn.softplus(p["b_rho"]) * p["b_eps"]
    return w, b


# --------------------------------- forward ----------------------------------

def bayesian_encoder_block_forward(x_ncdhw, params, alphas, *, stride, pad,
                                   prior_mean, prior_sigma, roll_sign):
    N, Cin, D, H, W = x_ncdhw.shape
    K = params["conv0"]["w_mu"].shape[0]
    Cout = params["conv0"]["w_mu"].shape[-1]
    Do = (D + 2 * pad - K) // stride + 1
    Ho = (H + 2 * pad - K) // stride + 1
    Wo = (W + 2 * pad - K) // stride + 1
    S = Do * Ho * Wo
    P = N * S                      # lane-dense position axis (= 128 here)
    KK = K * K * K
    # Demo-sized: the flattened (batch*spatial) axis exactly fills the lanes.
    # TODO(synk): for realistic shapes add a batch/spatial grid axis marked
    # "parallel" (v7x megacore) + a K-reduction axis, and re-derive per-step
    # VMEM against v7x's 64 MiB (32 MiB default scoped, double-buffered).

    # ---- sample Bayesian conv weights (elementwise glue) ----
    w0, b0 = sample_weights(params["conv0"])
    w1, b1 = sample_weights(params["conv1"])
    w2, b2 = sample_weights(params["conv2"])
    wr, br = sample_weights(params["residual"])

    # ---- ONE transposed im2col of the input, shared by conv0 + residual conv.
    # rows = k*Cin + ci; row KK*Cin is a ones-row folding the bias; padded to a
    # 128-aligned contraction; cast to bf16 for the MXU.
    # NOTE(perf-audit): this prologue is pure slicing/stack/transpose data
    # movement; at these sizes XLA fuses it into a couple of copies feeding the
    # 32 KB a0t -- revisit with a single gather only if it shows in a profile.
    x = jnp.transpose(x_ncdhw, (0, 2, 3, 4, 1)).astype(jnp.float32)     # NDHWC
    xp = jnp.pad(x, ((0, 0), (pad, pad), (pad, pad), (pad, pad), (0, 0)))
    patches = []
    for kd in range(K):
        for kh in range(K):
            for kw in range(K):
                patches.append(xp[:, kd:kd + Do * stride:stride,
                                  kh:kh + Ho * stride:stride,
                                  kw:kw + Wo * stride:stride, :])
    a0t = jnp.transpose(jnp.stack(patches, axis=0), (0, 5, 1, 2, 3, 4))
    a0t = a0t.reshape(KK * Cin, P)
    kc0 = KK * Cin
    kc0_pad = max(128, -(-(kc0 + 1) // 128) * 128)
    a0t = jnp.pad(a0t, ((0, kc0_pad - kc0), (0, 0)))
    a0t = a0t.at[kc0, :].set(1.0).astype(jnp.bfloat16)

    def fold_strided_weight(w, b):
        wt = jnp.transpose(w.reshape(KK, Cin, Cout), (2, 0, 1)).reshape(Cout, kc0)
        wt = jnp.pad(wt, ((0, 0), (0, kc0_pad - kc0)))
        return wt.at[:, kc0].set(b)

    # conv0 and residual weights stacked -> ONE fused strided matmul in-kernel.
    w0rt = jnp.concatenate([fold_strided_weight(w0, b0),
                            fold_strided_weight(wr, br)],
                           axis=0).astype(jnp.bfloat16)          # (2*Cout, kc0_pad)

    # ---- stride-1 conv weights, transposed, bias folded as column kc1;
    # contraction padded to a 128-multiple (256) for MXU lane alignment.
    kc1 = KK * Cout
    kc1_pad = -(-(kc1 + Cout) // 128) * 128

    def fold_same_weight(w, b):
        wt = jnp.transpose(w.reshape(KK, Cout, Cout), (2, 0, 1)).reshape(Cout, kc1)
        wt = jnp.pad(wt, ((0, 0), (0, kc1_pad - kc1)))
        return wt.at[:, kc1].set(b).astype(jnp.bfloat16)

    w1t = fold_same_weight(w1, b1)
    w2t = fold_same_weight(w2, b2)

    # ---- static lane-roll shift table + boundary masks for the stride-1 convs
    # (one row per tap; Cout sublane broadcast happens in-kernel).
    s_idx = np.arange(S)
    dd_ = s_idx // (Ho * Wo)
    hh_ = (s_idx // Wo) % Ho
    ww_ = s_idx % Wo
    masks = np.zeros((KK, S), np.float32)
    shifts = []
    k = 0
    for kd in range(K):
        for kh in range(K):
            for kw in range(K):
                od, oh, ow = kd - pad, kh - pad, kw - pad
                off = od * (Ho * Wo) + oh * Wo + ow
                shifts.append(int((roll_sign * off) % P))
                ok = ((dd_ + od >= 0) & (dd_ + od < Do)
                      & (hh_ + oh >= 0) & (hh_ + oh < Ho)
                      & (ww_ + ow >= 0) & (ww_ + ow < Wo))
                masks[k] = ok.astype(np.float32)
                k += 1
    KK_pad = -(-KK // 8) * 8
    roll_mask_np = np.zeros((KK_pad, P), np.float32)
    roll_mask_np[:KK] = np.tile(masks, (1, N))       # same spatial mask per batch
    roll_mask = jnp.asarray(roll_mask_np)

    # ---- KL( N(mu, softplus(rho)) || N(prior_mean, prior_sigma) ), computed
    # XLA-side (parameter-only reduction, independent of the conv path; XLA
    # overlaps it with the pallas_call and CSEs softplus(rho) with sampling).
    def kl_term(mu, rho):
        sq = jax.nn.softplus(rho)
        return jnp.sum(jnp.log(prior_sigma) - jnp.log(sq)
                       + (sq * sq + (mu - prior_mean) ** 2)
                       / (2.0 * prior_sigma * prior_sigma) - 0.5)

    kl = jnp.float32(0.0)
    for name in ("conv0", "conv1", "conv2", "residual"):
        kl = kl + kl_term(params[name]["w_mu"], params[name]["w_rho"])
        kl = kl + kl_term(params[name]["b_mu"], params[name]["b_rho"])

    # ---- the fused kernel call ----
    kernel = functools.partial(
        _fused_encoder_kernel,
        n_batch=N, s_vol=S, cout=Cout, shifts=tuple(shifts), kc1_pad=kc1_pad)

    flops = 2 * (2 * Cout) * kc0_pad * P + 2 * (2 * Cout * kc1_pad * P)
    transc = 3 * Cout                                        # rsqrt per IN/channel
    bytes_accessed = int(a0t.size * 2 + w0rt.size * 2 + w1t.size * 2
                         + w2t.size * 2 + roll_mask.size * 4 + alphas.size * 4
                         + Cout * P * 4)

    vmem = pl.BlockSpec(memory_space=pltpu.MemorySpace.VMEM)
    smem = pl.BlockSpec(memory_space=pltpu.MemorySpace.SMEM)
    out_cp = pl.pallas_call(
        kernel,
        out_shape=jax.ShapeDtypeStruct((Cout, P), jnp.float32),
        in_specs=[vmem, vmem, vmem, vmem, vmem, smem],
        out_specs=vmem,
        compiler_params=pltpu.CompilerParams(),   # dimension_semantics when a grid is added
        cost_estimate=pl.CostEstimate(flops=flops, transcendentals=transc,
                                      bytes_accessed=bytes_accessed),
    )(a0t, w0rt, w1t, w2t, roll_mask, alphas)

    out = jnp.transpose(out_cp.reshape(Cout, N, Do, Ho, Wo), (1, 0, 2, 3, 4))
    return out, kl
    # TODO(synk): dropout p>0 is not implemented (p=0.0 -> identity here).


# ----------------------- pure-JAX reference (for checking) ------------------

def _reference_forward(x_ncdhw, params, alphas, *, stride, pad,
                       prior_mean, prior_sigma):
    x = jnp.transpose(x_ncdhw, (0, 2, 3, 4, 1)).astype(jnp.float32)

    def conv(inp, w, b, s):
        out = lax.conv_general_dilated(
            inp, w, window_strides=(s, s, s), padding=[(pad, pad)] * 3,
            dimension_numbers=("NDHWC", "DHWIO", "NDHWC"),
            precision=lax.Precision.HIGHEST)
        return out + b

    def adn(y, a):
        mean = jnp.mean(y, axis=(1, 2, 3), keepdims=True)
        var = jnp.mean((y - mean) ** 2, axis=(1, 2, 3), keepdims=True)
        yn = (y - mean) * lax.rsqrt(var + 1e-5)
        return jnp.where(yn >= 0.0, yn, a * yn)

    w0, b0 = sample_weights(params["conv0"])
    w1, b1 = sample_weights(params["conv1"])
    w2, b2 = sample_weights(params["conv2"])
    wr, br = sample_weights(params["residual"])
    y = adn(conv(x, w0, b0, stride), alphas[0])
    y = adn(conv(y, w1, b1, 1), alphas[1])
    y = adn(conv(y, w2, b2, 1), alphas[2])
    out = y + conv(x, wr, br, stride)

    kl = jnp.float32(0.0)
    for name in ("conv0", "conv1", "conv2", "residual"):
        for mu, rho in ((params[name]["w_mu"], params[name]["w_rho"]),
                        (params[name]["b_mu"], params[name]["b_rho"])):
            sq = jax.nn.softplus(rho)
            kl = kl + jnp.sum(jnp.log(prior_sigma) - jnp.log(sq)
                              + (sq * sq + (mu - prior_mean) ** 2)
                              / (2.0 * prior_sigma * prior_sigma) - 0.5)
    return jnp.transpose(out, (0, 4, 1, 2, 3)), kl


# ----------------------------------- main ------------------------------------

if __name__ == "__main__":
    Nb, Cin, Cout, D = 2, 4, 8, 8
    K, STRIDE, PAD = 3, 2, 1
    prior_mean, prior_variance = 0.0, 0.1
    posterior_mu_init, posterior_rho_init, std = 0.0, -3.0, 0.1
    # bayesian-torch uses `prior_variance` directly as the prior sigma in KL.
    prior_sigma = float(prior_variance)

    key = jax.random.PRNGKey(0)
    kx, k0, k1, k2, kr = jax.random.split(key, 5)
    x = jax.random.normal(kx, (Nb, Cin, D, D, D), jnp.float32)   # NCDHW like torch

    init = functools.partial(init_bayes_conv,
                             posterior_mu_init=posterior_mu_init,
                             posterior_rho_init=posterior_rho_init, std=std)
    params = {
        "conv0": init(k0, Cin, Cout, K),
        "conv1": init(k1, Cout, Cout, K),
        "conv2": init(k2, Cout, Cout, K),
        "residual": init(kr, Cin, Cout, K),
    }
    # One PReLU parameter per ADN layer (torch default init 0.25).
    alphas = jnp.full((3,), 0.25, jnp.float32)

    roll_sign = _detect_roll_sign()
    fwd = jax.jit(functools.partial(bayesian_encoder_block_forward,
                                    stride=STRIDE, pad=PAD,
                                    prior_mean=prior_mean,
                                    prior_sigma=prior_sigma,
                                    roll_sign=roll_sign))
    out, kl = fwd(x, params, alphas)
    jax.block_until_ready((out, kl))

    Ds = (D + 2 * PAD - K) // STRIDE + 1
    assert out.shape == (Nb, Cout, Ds, Ds, Ds), out.shape
    assert bool(jnp.isfinite(out).all()) and bool(jnp.isfinite(kl))

    # Correctness check against a pure-JAX f32 reference (loose tolerance since
    # the kernel runs its conv matmuls in bf16 on the MXU with f32 accumulate).
    out_ref, kl_ref = _reference_forward(x, params, alphas, stride=STRIDE,
                                         pad=PAD, prior_mean=prior_mean,
                                         prior_sigma=prior_sigma)
    np.testing.assert_allclose(np.asarray(out), np.asarray(out_ref),
                               rtol=1e-1, atol=2e-1)
    np.testing.assert_allclose(float(kl), float(kl_ref), rtol=1e-5, atol=1e-4)

    print("KERNEL_OK")
</pallas_src>

<mosaic_0001>
module attributes {stable_mosaic.version = 11 : i64} {
  func.func @kern(%arg0: memref<8x128xf32, #tpu.memory_space<vmem>>, %arg1: memref<8x128xf32, #tpu.memory_space<vmem>>) attributes {dimension_semantics = [], scalar_prefetch = 0 : i64, scratch_operands = 0 : i64, tpu.core_type = #tpu.core_type<tc>} {
    %c0 = arith.constant 0 : index
    %c0_0 = arith.constant 0 : index
    %0 = vector.load %arg0[%c0, %c0_0] : memref<8x128xf32, #tpu.memory_space<vmem>>, vector<8x128xf32>
    %c1_i32 = arith.constant 1 : i32
    %1 = tpu.dynamic_rotate %0 by %c1_i32 dim 1 : vector<8x128xf32>, i32 -> vector<8x128xf32>
    %c0_1 = arith.constant 0 : index
    %c0_2 = arith.constant 0 : index
    %2 = vector.load %arg1[%c0_1, %c0_2] : memref<8x128xf32, #tpu.memory_space<vmem>>, vector<8x128xf32>
    tpu.vector_store %arg1[%c0_1, %c0_2], %1 {strides = array<i32>} : memref<8x128xf32, #tpu.memory_space<vmem>>, vector<8x128xf32>,
    return
  }
}

</mosaic_0001>

<llo_original>
// kernel: tpu_custom_call.1
$region0: #{tpu_custom_call.1}
  #allocation0 [shape = 'u32[]', space=smem, size = 0x4, offset = 0x4, fixed_abs, tag = 'smem constant byte address 0x4 - core index']
  #allocation1 [shape = 'u32[72,128]{1,0:T(1,128)}', space=vmem, size = 0x9000, scoped, tag = 'internal scratch']
  %s0 = inlined_call_operand.hbm [shape: f32[8,128], index: 0, kind: input, shape index: {}]
  %s1 = inlined_call_operand.hbm [shape: f32[8,128], index: 1, kind: output, shape index: {}]
  %s2 = sld [smem:[#allocation0]]
  $region18: #{tpu_custom_call.1} parent=0
    _
  %s4 = ssub.s32 1, %s2
  %s5 = scalar_select 0, %s4, %s2
  $region1: #{tpu_custom_call.1} parent=0
    #allocation2 [shape = 'u8[4096]{0}', space=vmem, size = 0x1000, scoped, tag = 'input window, operand 0, single buffered']
    #allocation3 [shape = 's32[1]{0}', space=sflag, size = 0x4, scoped, tag = 'scoped memory for tpu_custom_call.1']
    #allocation4 [shape = 's32[1]{0}', space=sflag, size = 0x4, scoped, tag = 'scoped memory for tpu_custom_call.1']
    #allocation5 [shape = 'u8[4096]{0}', space=vmem, size = 0x1000, scoped, tag = 'output window, operand 0, single buffered']
    %6 = vsyncpa [#allocation3], 0
    %7 = vsyncpa [#allocation4], 0
    // Predicated region
    $region2: #{tpu_custom_call.1} parent=1 // pred_check
      _
    $region3: #{tpu_custom_call.1} parent=1 // pred_check_branch
      %9 = sbr.rel (0) target = $region5
    $region4: #{tpu_custom_call.1} parent=1 // pred_region
      %11 = vsyncadd [#allocation3], 0
      %s13 = sshll.u32 %s0, 4
      %s14 = int_to_ptr.hbm [resolvable:$true] %s13
      %s15 = sshll.u32 [#allocation2], 4
      %s16 = int_to_ptr.vmem [resolvable:$true] %s15
      %18 = dma.hbm_to_vmem [thread:$0]  %s14, 128, %s16, [#allocation3]
    $region5: #{tpu_custom_call.1} parent=1 // pred_fallthru
      _
    // Predicated region
    $region6: #{tpu_custom_call.1} parent=1 // pred_check
      _
    $region7: #{tpu_custom_call.1} parent=1 // pred_check_branch
      %20 = sbr.rel (0) target = $region9
    $region8: #{tpu_custom_call.1} parent=1 // pred_region
      %22 = dma.done [#allocation3], 128
    $region9: #{tpu_custom_call.1} parent=1 // pred_fallthru
      _
    %v23 = vld [vmem:[#allocation2] sm:$0xff]
    %24 = vrot.lane.b32.xlu0 %v23, 1
    %v25 = vpop.permute.xlu0 %24
    %26 = vst [vmem:[#allocation5] sm:$0xff] %v25
    // Predicated region
    $region10: #{tpu_custom_call.1} parent=1 // pred_check
      _
    $region11: #{tpu_custom_call.1} parent=1 // pred_check_branch
      %28 = sbr.rel (0) target = $region13
    $region12: #{tpu_custom_call.1} parent=1 // pred_region
      %30 = vsyncadd [#allocation4], 0
      %s32 = sshll.u32 [#allocation5], 4
      %s33 = int_to_ptr.vmem [resolvable:$true] %s32
      %s34 = sshll.u32 %s1, 4
      %s35 = int_to_ptr.hbm [resolvable:$true] %s34
      %37 = dma.vmem_to_hbm [thread:$0]  %s33, 128, %s35, [#allocation4]
    $region13: #{tpu_custom_call.1} parent=1 // pred_fallthru
      _
    // Predicated region
    $region14: #{tpu_custom_call.1} parent=1 // pred_check
      _
    $region15: #{tpu_custom_call.1} parent=1 // pred_check_branch
      %39 = sbr.rel (0) target = $region17
    $region16: #{tpu_custom_call.1} parent=1 // pred_region
      %41 = dma.done [#allocation4], 128
    $region17: #{tpu_custom_call.1} parent=1 // pred_fallthru
      _
    %42 = vsyncpa [#allocation3], 1
    %43 = vsyncpa [#allocation4], 1

</llo_original>
